<compile_context>
chip_gen: v7x
topology: tpu7x:2x2x1
jax: 0.10.0
libtpu: 0.0.40
codegen_flags: <defaults>
</compile_context>

<pallas_src>
import functools

import jax
import jax.numpy as jnp
from jax.experimental import pallas as pl
from jax.experimental.pallas import tpu as pltpu


def _mlp_kernel(pos_freqs, num_layers, mm_dtype, *refs):
    # refs layout:
    #   pts | w0 b0 | (w_i b_i) * num_layers | w_out b_out | out
    # out block (2, tile): row 0 = raw_density, row 1 = softplus(raw).
    pts_ref = refs[0]
    out_ref = refs[-1]
    w_refs = refs[1:-1]

    x = pts_ref[...]  # (3, tile) f32

    def dot(w_ref, h):
        # mm_dtype operands, f32 accumulation on the MXU.
        return jnp.dot(w_ref[...], h, preferred_element_type=jnp.float32)

    if pos_freqs > 0:
        # Positional encoding on the VPU: scaled[c*F + f, :] = x[c, :] * 2**f
        # (same channel ordering as the PyTorch reference), exact in f32.
        scaled = jnp.concatenate(
            [x[c:c + 1, :] * (2.0 ** f)
             for c in range(3) for f in range(pos_freqs)],
            axis=0)                                           # (3F, tile)
        # Virtual concat [x, sin, cos] -> single fused first-layer matmul.
        feat = jnp.concatenate([x, jnp.sin(scaled), jnp.cos(scaled)], axis=0)
    else:
        feat = x

    w0 = w_refs[0]
    b0 = w_refs[1][...]
    h = jnp.maximum(dot(w0, feat.astype(mm_dtype)) + b0, 0.0)
    h = h.astype(mm_dtype)  # keep inter-layer activations in matmul dtype
    idx = 2

    # Hidden Linear + ReLU blocks.
    for _ in range(num_layers):
        w = w_refs[idx]
        b = w_refs[idx + 1][...]
        idx += 2
        h = jnp.maximum(dot(w, h) + b, 0.0).astype(mm_dtype)

    # Final Linear -> 1 channel.
    wo = w_refs[idx]
    bo = w_refs[idx + 1][...]
    raw = dot(wo, h) + bo  # (1, tile) f32

    # Numerically stable softplus: max(x, 0) + log1p(exp(-|x|)).
    dens = jnp.maximum(raw, 0.0) + jnp.log1p(jnp.exp(-jnp.abs(raw)))

    # Single lane-dense packed store: row 0 = raw, row 1 = density.
    out_ref[...] = jnp.concatenate([raw, dens], axis=0)


def _prep_weights(params, mm_dtype):
    """Transpose weights to (out, in); biases as (out, 1) f32 columns."""
    args, specs = [], []

    def add(a):
        args.append(a)
        specs.append(pl.BlockSpec(a.shape, lambda i: (0, 0)))

    for w, b in params:
        add(jnp.asarray(w).T.astype(mm_dtype))                 # (out, in)
        add(jnp.asarray(b).reshape(-1, 1).astype(jnp.float32))  # (out, 1)
    return args, specs


def _round_up(x, m):
    return pl.cdiv(x, m) * m


def _choose_tile(M, tile_m):
    tile_m = max(128, (int(tile_m) // 128) * 128)
    m128 = _round_up(M, 128)
    tile = min(tile_m, m128)
    # Keep >= 2 grid steps whenever possible so the "parallel" axis can shard
    # across v7x's two TensorCores; on 1-TC chips (v5e/v6e) the extra step
    # costs only ~0.35us.
    if tile == m128 and m128 > 128:
        tile = _round_up(m128 // 2, 128)
    return tile


def geometry_mlp_decoder(pts, params, *, pos_freqs, num_layers,
                         tile_m=8192, matmul_dtype=jnp.bfloat16):
    """pts: (N, Rays, Samples, 3). params: list of (w (in,out), b (out,))."""
    assert pts.ndim == 4 and pts.shape[-1] == 3
    N, R, S, _ = pts.shape
    M = N * R * S

    tile = _choose_tile(M, tile_m)
    M128 = _round_up(M, 128)            # pad only to a lane multiple (<=127 cols)
    grid = pl.cdiv(M128, tile)          # ragged final block handled by Pallas

    # Transposed, lane-dense input: (3, M128), batch dim on lanes.
    x_t = pts.reshape(M, 3).astype(jnp.float32).T
    if M128 != M:
        x_t = jnp.pad(x_t, ((0, 0), (0, M128 - M)))

    in_args = [x_t]
    in_specs = [pl.BlockSpec((3, tile), lambda i: (0, i))]

    w_args, w_specs = _prep_weights(params, matmul_dtype)
    in_args += w_args
    in_specs += w_specs

    kernel = functools.partial(_mlp_kernel, pos_freqs, num_layers, matmul_dtype)

    out = pl.pallas_call(
        kernel,
        out_shape=jax.ShapeDtypeStruct((2, M128), jnp.float32),
        grid=(grid,),
        in_specs=in_specs,
        out_specs=pl.BlockSpec((2, tile), lambda i: (0, i)),
        compiler_params=pltpu.CompilerParams(
            dimension_semantics=("parallel",),
        ),
    )(*in_args)

    out = out[:, :M]                    # single small slice (no-op if M%128==0)
    raw = out[0].reshape(N, R, S)
    dens = out[1].reshape(N, R, S)
    return {"raw_density": raw, "density": dens}


def init_params(key, pos_freqs, hidden_size, num_layers):
    # Deterministic synthetic init (stand-in for init_seq); weights are (in, out).
    # TODO(synk): the original init_seq initializer is not specified in the module.
    in_c = 3 + 6 * pos_freqs
    dims = [in_c] + [hidden_size] * (num_layers + 1) + [1]
    params = []
    for i in range(len(dims) - 1):
        key, kw, kb = jax.random.split(key, 3)
        scale = 1.0 / jnp.sqrt(jnp.float32(dims[i]))
        w = jax.random.normal(kw, (dims[i], dims[i + 1]), jnp.float32) * scale
        b = jax.random.normal(kb, (dims[i + 1],), jnp.float32) * 0.01
        params.append((w, b))
    return params


def _reference_forward(pts, params, pos_freqs):
    # Pure-JAX reference of the PyTorch forward for verification.
    x = pts.astype(jnp.float32)
    if pos_freqs > 0:
        freq_bands = 2.0 ** jnp.arange(pos_freqs, dtype=jnp.float32)
        scaled = (x[..., None] * freq_bands).reshape(x.shape[:-1] + (3 * pos_freqs,))
        feat = jnp.concatenate([x, jnp.sin(scaled), jnp.cos(scaled)], axis=-1)
    else:
        feat = x
    h = feat
    for li, (w, b) in enumerate(params):
        h = h @ w + b
        if li < len(params) - 1:
            h = jnp.maximum(h, 0.0)
    raw = h[..., 0]
    return {"raw_density": raw, "density": jax.nn.softplus(raw)}


if __name__ == "__main__":
    pos_freqs = 2
    hidden_size = 32
    num_layers = 2

    key = jax.random.PRNGKey(0)
    kp, kx = jax.random.split(key)
    params = init_params(kp, pos_freqs, hidden_size, num_layers)

    # pts: (N, Rays, Samples, 3)
    pts = jax.random.normal(kx, (2, 4, 8, 3), jnp.float32)

    ref = _reference_forward(pts, params, pos_freqs)

    # Exact f32 path (tight tolerances).
    out_f32 = geometry_mlp_decoder(
        pts, params, pos_freqs=pos_freqs, num_layers=num_layers,
        matmul_dtype=jnp.float32,
    )
    jax.block_until_ready(out_f32["density"])
    assert out_f32["raw_density"].shape == (2, 4, 8)
    assert out_f32["density"].shape == (2, 4, 8)
    assert jnp.allclose(out_f32["raw_density"], ref["raw_density"], atol=1e-4, rtol=1e-4)
    assert jnp.allclose(out_f32["density"], ref["density"], atol=1e-4, rtol=1e-4)

    # Default fast path: bf16 operands + f32 accumulation (v5e/v6e/v7x MXU).
    out_bf16 = geometry_mlp_decoder(
        pts, params, pos_freqs=pos_freqs, num_layers=num_layers,
    )
    jax.block_until_ready(out_bf16["density"])
    assert out_bf16["raw_density"].shape == (2, 4, 8)
    assert jnp.allclose(out_bf16["raw_density"], ref["raw_density"], atol=5e-2, rtol=5e-2)
    assert jnp.allclose(out_bf16["density"], ref["density"], atol=5e-2, rtol=5e-2)

    # pos_freqs == 0 branch (no positional encoding).
    params0 = init_params(kp, 0, hidden_size, num_layers)
    ref0 = _reference_forward(pts, params0, 0)
    out0 = geometry_mlp_decoder(
        pts, params0, pos_freqs=0, num_layers=num_layers,
        matmul_dtype=jnp.float32,
    )
    jax.block_until_ready(out0["density"])
    assert jnp.allclose(out0["raw_density"], ref0["raw_density"], atol=1e-4, rtol=1e-4)
    assert jnp.allclose(out0["density"], ref0["density"], atol=1e-4, rtol=1e-4)

    print("KERNEL_OK")
</pallas_src>

<mosaic_0001>
module attributes {stable_mosaic.version = 11 : i64} {
  func.func @_mlp_kernel(%arg0: i32, %arg1: memref<3x128xf32, #tpu.memory_space<vmem>>, %arg2: memref<32x15xf32, #tpu.memory_space<vmem>>, %arg3: memref<32x1xf32, #tpu.memory_space<vmem>>, %arg4: memref<32x32xf32, #tpu.memory_space<vmem>>, %arg5: memref<32x1xf32, #tpu.memory_space<vmem>>, %arg6: memref<32x32xf32, #tpu.memory_space<vmem>>, %arg7: memref<32x1xf32, #tpu.memory_space<vmem>>, %arg8: memref<1x32xf32, #tpu.memory_space<vmem>>, %arg9: memref<1x1xf32, #tpu.memory_space<vmem>>, %arg10: memref<2x128xf32, #tpu.memory_space<vmem>>) attributes {dimension_semantics = [#tpu.dimension_semantics<parallel>], iteration_bounds = array<i64: 1>, scalar_prefetch = 0 : i64, scratch_operands = 0 : i64, tpu.core_type = #tpu.core_type<tc>, window_params = [{transform_indices = @transform_0, window_bounds = array<i64: 3, 128>}, {pipeline_mode = #tpu.pipeline_mode<synchronous>, transform_indices = @transform_1, window_bounds = array<i64: 32, 15>}, {pipeline_mode = #tpu.pipeline_mode<synchronous>, transform_indices = @transform_2, window_bounds = array<i64: 32, 1>}, {pipeline_mode = #tpu.pipeline_mode<synchronous>, transform_indices = @transform_3, window_bounds = array<i64: 32, 32>}, {pipeline_mode = #tpu.pipeline_mode<synchronous>, transform_indices = @transform_4, window_bounds = array<i64: 32, 1>}, {pipeline_mode = #tpu.pipeline_mode<synchronous>, transform_indices = @transform_5, window_bounds = array<i64: 32, 32>}, {pipeline_mode = #tpu.pipeline_mode<synchronous>, transform_indices = @transform_6, window_bounds = array<i64: 32, 1>}, {pipeline_mode = #tpu.pipeline_mode<synchronous>, transform_indices = @transform_7, window_bounds = array<i64: 1, 32>}, {pipeline_mode = #tpu.pipeline_mode<synchronous>, transform_indices = @transform_8, window_bounds = array<i64: 1, 1>}, {transform_indices = @transform_9, window_bounds = array<i64: 2, 128>}]} {
    %c0 = arith.constant 0 : index
    %c0_0 = arith.constant 0 : index
    %0 = vector.load %arg1[%c0, %c0_0] : memref<3x128xf32, #tpu.memory_space<vmem>>, vector<3x128xf32>
    %1 = vector.extract_strided_slice %0 {offsets = [0, 0], sizes = [1, 128], strides = [1, 1]} : vector<3x128xf32> to vector<1x128xf32>
    %cst = arith.constant 1.000000e+00 : f32
    %2 = vector.broadcast %cst : f32 to vector<1x128xf32>
    %3 = arith.mulf %1, %2 : vector<1x128xf32>
    %4 = vector.extract_strided_slice %0 {offsets = [0, 0], sizes = [1, 128], strides = [1, 1]} : vector<3x128xf32> to vector<1x128xf32>
    %cst_1 = arith.constant 2.000000e+00 : f32
    %5 = vector.broadcast %cst_1 : f32 to vector<1x128xf32>
    %6 = arith.mulf %4, %5 : vector<1x128xf32>
    %7 = vector.extract_strided_slice %0 {offsets = [1, 0], sizes = [1, 128], strides = [1, 1]} : vector<3x128xf32> to vector<1x128xf32>
    %cst_2 = arith.constant 1.000000e+00 : f32
    %8 = vector.broadcast %cst_2 : f32 to vector<1x128xf32>
    %9 = arith.mulf %7, %8 : vector<1x128xf32>
    %10 = vector.extract_strided_slice %0 {offsets = [1, 0], sizes = [1, 128], strides = [1, 1]} : vector<3x128xf32> to vector<1x128xf32>
    %cst_3 = arith.constant 2.000000e+00 : f32
    %11 = vector.broadcast %cst_3 : f32 to vector<1x128xf32>
    %12 = arith.mulf %10, %11 : vector<1x128xf32>
    %13 = vector.extract_strided_slice %0 {offsets = [2, 0], sizes = [1, 128], strides = [1, 1]} : vector<3x128xf32> to vector<1x128xf32>
    %cst_4 = arith.constant 1.000000e+00 : f32
    %14 = vector.broadcast %cst_4 : f32 to vector<1x128xf32>
    %15 = arith.mulf %13, %14 : vector<1x128xf32>
    %16 = vector.extract_strided_slice %0 {offsets = [2, 0], sizes = [1, 128], strides = [1, 1]} : vector<3x128xf32> to vector<1x128xf32>
    %cst_5 = arith.constant 2.000000e+00 : f32
    %17 = vector.broadcast %cst_5 : f32 to vector<1x128xf32>
    %18 = arith.mulf %16, %17 : vector<1x128xf32>
    %19 = tpu.concatenate %3, %6, %9, %12, %15, %18 in 0 : vector<1x128xf32>, vector<1x128xf32>, vector<1x128xf32>, vector<1x128xf32>, vector<1x128xf32>, vector<1x128xf32> -> vector<6x128xf32>
    %20 = math.sin %19 : vector<6x128xf32>
    %21 = math.cos %19 : vector<6x128xf32>
    %22 = tpu.concatenate %0, %20, %21 in 0 : vector<3x128xf32>, vector<6x128xf32>, vector<6x128xf32> -> vector<15x128xf32>
    %c0_6 = arith.constant 0 : index
    %c0_7 = arith.constant 0 : index
    %23 = vector.load %arg3[%c0_6, %c0_7] : memref<32x1xf32, #tpu.memory_space<vmem>>, vector<32x1xf32>
    %c0_8 = arith.constant 0 : index
    %c0_9 = arith.constant 0 : index
    %24 = vector.load %arg2[%c0_8, %c0_9] : memref<32x15xf32, #tpu.memory_space<vmem>>, vector<32x15xf32>
    %cst_10 = arith.constant dense<0.000000e+00> : vector<32x128xf32>
    %25 = tpu.matmul %24, %22, %cst_10 {dimension_numbers = #tpu.dot_dimension_numbers<[1], [0], [0], [1], [0, 0, 1, 1], [], []>} : vector<32x15xf32>, vector<15x128xf32>, vector<32x128xf32> -> vector<32x128xf32>
    %26 = vector.broadcast %23 : vector<32x1xf32> to vector<32x128xf32>
    %27 = arith.addf %25, %26 : vector<32x128xf32>
    %cst_11 = arith.constant 0.000000e+00 : f32
    %28 = vector.broadcast %cst_11 : f32 to vector<32x128xf32>
    %29 = arith.maximumf %27, %28 : vector<32x128xf32>
    %c0_12 = arith.constant 0 : index
    %c0_13 = arith.constant 0 : index
    %30 = vector.load %arg5[%c0_12, %c0_13] : memref<32x1xf32, #tpu.memory_space<vmem>>, vector<32x1xf32>
    %c0_14 = arith.constant 0 : index
    %c0_15 = arith.constant 0 : index
    %31 = vector.load %arg4[%c0_14, %c0_15] : memref<32x32xf32, #tpu.memory_space<vmem>>, vector<32x32xf32>
    %cst_16 = arith.constant dense<0.000000e+00> : vector<32x128xf32>
    %32 = tpu.matmul %31, %29, %cst_16 {dimension_numbers = #tpu.dot_dimension_numbers<[1], [0], [0], [1], [0, 0, 1, 1], [], []>} : vector<32x32xf32>, vector<32x128xf32>, vector<32x128xf32> -> vector<32x128xf32>
    %33 = vector.broadcast %30 : vector<32x1xf32> to vector<32x128xf32>
    %34 = arith.addf %32, %33 : vector<32x128xf32>
    %cst_17 = arith.constant 0.000000e+00 : f32
    %35 = vector.broadcast %cst_17 : f32 to vector<32x128xf32>
    %36 = arith.maximumf %34, %35 : vector<32x128xf32>
    %c0_18 = arith.constant 0 : index
    %c0_19 = arith.constant 0 : index
    %37 = vector.load %arg7[%c0_18, %c0_19] : memref<32x1xf32, #tpu.memory_space<vmem>>, vector<32x1xf32>
    %c0_20 = arith.constant 0 : index
    %c0_21 = arith.constant 0 : index
    %38 = vector.load %arg6[%c0_20, %c0_21] : memref<32x32xf32, #tpu.memory_space<vmem>>, vector<32x32xf32>
    %cst_22 = arith.constant dense<0.000000e+00> : vector<32x128xf32>
    %39 = tpu.matmul %38, %36, %cst_22 {dimension_numbers = #tpu.dot_dimension_numbers<[1], [0], [0], [1], [0, 0, 1, 1], [], []>} : vector<32x32xf32>, vector<32x128xf32>, vector<32x128xf32> -> vector<32x128xf32>
    %40 = vector.broadcast %37 : vector<32x1xf32> to vector<32x128xf32>
    %41 = arith.addf %39, %40 : vector<32x128xf32>
    %cst_23 = arith.constant 0.000000e+00 : f32
    %42 = vector.broadcast %cst_23 : f32 to vector<32x128xf32>
    %43 = arith.maximumf %41, %42 : vector<32x128xf32>
    %c0_24 = arith.constant 0 : index
    %c0_25 = arith.constant 0 : index
    %44 = vector.load %arg9[%c0_24, %c0_25] : memref<1x1xf32, #tpu.memory_space<vmem>>, vector<1x1xf32>
    %c0_26 = arith.constant 0 : index
    %c0_27 = arith.constant 0 : index
    %45 = vector.load %arg8[%c0_26, %c0_27] : memref<1x32xf32, #tpu.memory_space<vmem>>, vector<1x32xf32>
    %cst_28 = arith.constant dense<0.000000e+00> : vector<1x128xf32>
    %46 = tpu.matmul %45, %43, %cst_28 {dimension_numbers = #tpu.dot_dimension_numbers<[1], [0], [0], [1], [0, 0, 1, 1], [], []>} : vector<1x32xf32>, vector<32x128xf32>, vector<1x128xf32> -> vector<1x128xf32>
    %47 = vector.broadcast %44 : vector<1x1xf32> to vector<1x128xf32>
    %48 = arith.addf %46, %47 : vector<1x128xf32>
    %cst_29 = arith.constant 0.000000e+00 : f32
    %49 = vector.broadcast %cst_29 : f32 to vector<1x128xf32>
    %50 = arith.maximumf %48, %49 : vector<1x128xf32>
    %51 = math.absf %48 : vector<1x128xf32>
    %cst_30 = arith.constant 0.000000e+00 : f32
    %52 = vector.broadcast %cst_30 : f32 to vector<1x128xf32>
    %53 = arith.subf %52, %51 : vector<1x128xf32>
    %54 = math.exp %53 : vector<1x128xf32>
    %55 = math.log1p %54 : vector<1x128xf32>
    %56 = arith.addf %50, %55 : vector<1x128xf32>
    %57 = tpu.concatenate %48, %56 in 0 : vector<1x128xf32>, vector<1x128xf32> -> vector<2x128xf32>
    %c0_31 = arith.constant 0 : index
    %c0_32 = arith.constant 0 : index
    %58 = vector.load %arg10[%c0_31, %c0_32] : memref<2x128xf32, #tpu.memory_space<vmem>>, vector<2x128xf32>
    tpu.vector_store %arg10[%c0_31, %c0_32], %57 {strides = array<i32>} : memref<2x128xf32, #tpu.memory_space<vmem>>, vector<2x128xf32>,
    return
  }
  func.func @transform_0(%arg0: i32) -> (i32, i32) {
    %c0_i32 = arith.constant 0 : i32
    %c0_i32_0 = arith.constant 0 : i32
    return %c0_i32, %arg0 : i32, i32
  }
  func.func @transform_1(%arg0: i32) -> (i32, i32) {
    %c0_i32 = arith.constant 0 : i32
    %c0_i32_0 = arith.constant 0 : i32
    %c0_i32_1 = arith.constant 0 : i32
    return %c0_i32, %c0_i32_0 : i32, i32
  }
  func.func @transform_2(%arg0: i32) -> (i32, i32) {
    %c0_i32 = arith.constant 0 : i32
    %c0_i32_0 = arith.constant 0 : i32
    %c0_i32_1 = arith.constant 0 : i32
    return %c0_i32, %c0_i32_0 : i32, i32
  }
  func.func @transform_3(%arg0: i32) -> (i32, i32) {
    %c0_i32 = arith.constant 0 : i32
    %c0_i32_0 = arith.constant 0 : i32
    %c0_i32_1 = arith.constant 0 : i32
    return %c0_i32, %c0_i32_0 : i32, i32
  }
  func.func @transform_4(%arg0: i32) -> (i32, i32) {
    %c0_i32 = arith.constant 0 : i32
    %c0_i32_0 = arith.constant 0 : i32
    %c0_i32_1 = arith.constant 0 : i32
    return %c0_i32, %c0_i32_0 : i32, i32
  }
  func.func @transform_5(%arg0: i32) -> (i32, i32) {
    %c0_i32 = arith.constant 0 : i32
    %c0_i32_0 = arith.constant 0 : i32
    %c0_i32_1 = arith.constant 0 : i32
    return %c0_i32, %c0_i32_0 : i32, i32
  }
  func.func @transform_6(%arg0: i32) -> (i32, i32) {
    %c0_i32 = arith.constant 0 : i32
    %c0_i32_0 = arith.constant 0 : i32
    %c0_i32_1 = arith.constant 0 : i32
    return %c0_i32, %c0_i32_0 : i32, i32
  }
  func.func @transform_7(%arg0: i32) -> (i32, i32) {
    %c0_i32 = arith.constant 0 : i32
    %c0_i32_0 = arith.constant 0 : i32
    %c0_i32_1 = arith.constant 0 : i32
    return %c0_i32, %c0_i32_0 : i32, i32
  }
  func.func @transform_8(%arg0: i32) -> (i32, i32) {
    %c0_i32 = arith.constant 0 : i32
    %c0_i32_0 = arith.constant 0 : i32
    %c0_i32_1 = arith.constant 0 : i32
    return %c0_i32, %c0_i32_0 : i32, i32
  }
  func.func @transform_9(%arg0: i32) -> (i32, i32) {
    %c0_i32 = arith.constant 0 : i32
    %c0_i32_0 = arith.constant 0 : i32
    return %c0_i32, %arg0 : i32, i32
  }
}

</mosaic_0001>

<llo_original>
// kernel: tpu_custom_call.1
$region0: #{tpu_custom_call.1}
  #allocation0 [shape = 'u32[]', space=smem, size = 0x4, offset = 0x4, fixed_abs, tag = 'smem constant byte address 0x4 - core index']
  #allocation1 [shape = 'u32[144,128]{1,0:T(1,128)}', space=vmem, size = 0x12000, scoped, tag = 'internal scratch']
  #allocation2 [shape = 'f32[1,1]{1,0:T(1,128)S(1)}', space=vmem, size = 0x200, scoped, tag = 'scoped memory for tpu_custom_call.1']
  %s0 = inlined_call_operand.vmem [shape: f32[3,128], index: 0, kind: input, shape index: {}]
  %s1 = inlined_call_operand.vmem [shape: f32[32,15], index: 1, kind: input, shape index: {}]
  %s2 = inlined_call_operand.vmem [shape: f32[32,1], index: 2, kind: input, shape index: {}]
  %s3 = inlined_call_operand.vmem [shape: f32[32,32], index: 3, kind: input, shape index: {}]
  %s4 = inlined_call_operand.vmem [shape: f32[32,1], index: 4, kind: input, shape index: {}]
  %s5 = inlined_call_operand.vmem [shape: f32[32,32], index: 5, kind: input, shape index: {}]
  %s6 = inlined_call_operand.vmem [shape: f32[32,1], index: 6, kind: input, shape index: {}]
  %s7 = inlined_call_operand.vmem [shape: f32[1,32], index: 7, kind: input, shape index: {}]
  %s8 = inlined_call_operand.<no memory space> [shape: f32[1,1], index: 8, kind: input, shape index: {}]
  %s9 = inlined_call_operand.hbm [shape: f32[2,128], index: 9, kind: output, shape index: {}]
  %s10 = sld [smem:[#allocation0]]
  $region46: #{tpu_custom_call.1} parent=0
    _
  %s12 = ssub.s32 1, %s10
  %s13 = scalar_select 0, %s12, %s10
  %v14 = vstv %s8
  %15 = vst [vmem:[#allocation2] sm:$0x1] %v14
  $region1: #{tpu_custom_call.1} parent=0
    #allocation3 [shape = 'u8[1024]{0}', space=vmem, size = 0x400, scoped, tag = 'output window, operand 0, single buffered']
    #allocation4 [shape = 's32[1]{0}', space=sflag, size = 0x4, scoped, tag = 'scoped memory for tpu_custom_call.1']
    %16 = vsyncpa [#allocation4], 0
    // Predicated region
    $region2: #{tpu_custom_call.1} parent=1 // pred_check
      _
    $region3: #{tpu_custom_call.1} parent=1 // pred_check_branch
      %18 = sbr.rel (0) target = $region5
    $region4: #{tpu_custom_call.1} parent=1 // pred_region
      _
    $region5: #{tpu_custom_call.1} parent=1 // pred_fallthru
      _
    // Predicated region
    $region6: #{tpu_custom_call.1} parent=1 // pred_check
      _
    $region7: #{tpu_custom_call.1} parent=1 // pred_check_branch
      %20 = sbr.rel (0) target = $region9
    $region8: #{tpu_custom_call.1} parent=1 // pred_region
      _
    $region9: #{tpu_custom_call.1} parent=1 // pred_fallthru
      _
    // Predicated region
    $region10: #{tpu_custom_call.1} parent=1 // pred_check
      _
    $region11: #{tpu_custom_call.1} parent=1 // pred_check_branch
      %22 = sbr.rel (0) target = $region13
    $region12: #{tpu_custom_call.1} parent=1 // pred_region
      _
    $region13: #{tpu_custom_call.1} parent=1 // pred_fallthru
      _
    // Predicated region
    $region14: #{tpu_custom_call.1} parent=1 // pred_check
      _
    $region15: #{tpu_custom_call.1} parent=1 // pred_check_branch
      %24 = sbr.rel (0) target = $region17
    $region16: #{tpu_custom_call.1} parent=1 // pred_region
      _
    $region17: #{tpu_custom_call.1} parent=1 // pred_fallthru
      _
    // Predicated region
    $region18: #{tpu_custom_call.1} parent=1 // pred_check
      _
    $region19: #{tpu_custom_call.1} parent=1 // pred_check_branch
      %26 = sbr.rel (0) target = $region21
    $region20: #{tpu_custom_call.1} parent=1 // pred_region
      _
    $region21: #{tpu_custom_call.1} parent=1 // pred_fallthru
      _
    // Predicated region
    $region22: #{tpu_custom_call.1} parent=1 // pred_check
      _
    $region23: #{tpu_custom_call.1} parent=1 // pred_check_branch
      %28 = sbr.rel (0) target = $region25
    $region24: #{tpu_custom_call.1} parent=1 // pred_region
      _
    $region25: #{tpu_custom_call.1} parent=1 // pred_fallthru
      _
    // Predicated region
    $region26: #{tpu_custom_call.1} parent=1 // pred_check
      _
    $region27: #{tpu_custom_call.1} parent=1 // pred_check_branch
      %30 = sbr.rel (0) target = $region29
    $region28: #{tpu_custom_call.1} parent=1 // pred_region
      _
    $region29: #{tpu_custom_call.1} parent=1 // pred_fallthru
      _
    // Predicated region
    $region30: #{tpu_custom_call.1} parent=1 // pred_check
      _
    $region31: #{tpu_custom_call.1} parent=1 // pred_check_branch
      %32 = sbr.rel (0) target = $region33
    $region32: #{tpu_custom_call.1} parent=1 // pred_region
      _
    $region33: #{tpu_custom_call.1} parent=1 // pred_fallthru
      _
    // Predicated region
    $region34: #{tpu_custom_call.1} parent=1 // pred_check
      _
    $region35: #{tpu_custom_call.1} parent=1 // pred_check_branch
      %34 = sbr.rel (0) target = $region37
    $region36: #{tpu_custom_call.1} parent=1 // pred_region
      _
    $region37: #{tpu_custom_call.1} parent=1 // pred_fallthru
      _
    %v35 = vld [vmem:[%s0] sm:$0x7]
    %v36 = vmul.f32 %v35, 2.0
    %v38 = vrot.slane %v36, 7
    %v41 = vrot.slane %v35, 7
    %v43 = vrot.slane %v36, 6
    %v45 = vrot.slane %v35, 6
    %v47 = vrot.slane %v36, 5
    %vm49 = vcmask 1040384
    %v50 = vsel %vm49, %v35, %v38
    %vm51 = vcmask 1041408
    %v52 = vsel %vm51, %v50, %v41
    %vm53 = vcmask 1042432
    %v54 = vsel %vm53, %v52, %v43
    %vm55 = vcmask 1043456
    %v56 = vsel %vm55, %v54, %v45
    %vm57 = vcmask 1044480
    %v58 = vsel %vm57, %v56, %v47
    %v59 = vand.u32 2147483647, %v58
    %vm60 = vcmp.le.f32.partialorder %v59, 0.7853982
    %vm61 = vcmp.lt.s32.totalorder %v58, 0
    %v62 = vand.u32 %v58, 2139095040
    %v63 = vshrl.u32 %v62, 23
    %v64 = vsub.s32 %v63, 127
    %v65 = vand.u32 2147483647, %v58
    %v66 = vand.u32 %v65, 8388607
    %v67 = vor.u32 %v66, 8388608
    %v68 = vsub.s32 0, %v67
    %v69 = vadd.s32 %v64, 1
    %vm70 = vcmp.gt.s32.totalorder %v69, 0
    %v71 = vsel %vm70, %v69, 0
    %v72 = vshrl.u32 %v71, 5
    %v73 = vand.u32 %v71, 31
    %v74 = vsub.s32 32, %v73
    %v75 = vshrl.u32 683565275, %v74
    %v76 = vshll.u32 683565275, %v73
    %v77 = vshrl.u32 2475754826, %v74
    %v78 = vor.u32 %v76, %v77
    %v79 = vshll.u32 2475754826, %v73
    %v80 = vshrl.u32 2131351028, %v74
    %v81 = vor.u32 %v79, %v80
    %v82 = vshll.u32 2131351028, %v73
    %v83 = vshrl.u32 2102212464, %v74
    %v84 = vor.u32 %v82, %v83
    %v85 = vshll.u32 2102212464, %v73
    %v86 = vshrl.u32 920167782, %v74
    %v87 = vor.u32 %v85, %v86
    %v88 = vshll.u32 920167782, %v73
    %v89 = vshrl.u32 1326507024, %v74
    %v90 = vor.u32 %v88, %v89
    %vm91 = vcmp.lt.s32.totalorder %v72, 1
    %vm92 = vcmp.lt.s32.totalorder %v72, 2
    %vm93 = vcmp.lt.s32.totalorder %v72, 3
    %vm94 = vcmp.lt.s32.totalorder %v72, 4
    %v95 = vsel %vm91, %v75, %v78
    %v96 = vsel %vm94, %v84, 2102212464
    %v97 = vsel %vm93, %v81, %v96
    %v98 = vsel %vm92, %v95, %v97
    %v99 = vsel %vm91, %v78, %v81
    %v100 = vsel %vm94, %v87, 920167782
    %v101 = vsel %vm93, %v84, %v100
    %v102 = vsel %vm92, %v99, %v101
    %v103 = vsel %vm91, %v81, %v84
    %v104 = vsel %vm94, %v90, 1326507024
    %v105 = vsel %vm93, %v87, %v104
    %v106 = vsel %vm92, %v103, %v105
    %v107 = vshll.u32 %v67, 8
    %v108 = vmul.u32.u64.compose %v107, %v106
    %v109 = vextract.low.u32 %v108
    %v110 = vextract.high.u32 %v108
    %v111 = vmul.u32.u64.compose %v107, %v102
    %v112 = vextract.low.u32 %v111
    %v113 = vextract.high.u32 %v111
    %v114 = vmul.u32 %v107, %v98
    %v115 = vadd.s32 %v110, %v112
    %vm116 = vc.u32 %v110, %v112
    %v117 = vadd.s32 %v113, 1
    %v118 = vsel %vm116, %v117, %v113
    %v119 = vadd.s32 %v114, %v118
    %v120 = vadd.s32 %v119, 536870912
    %v121 = vshrl.u32 %v120, 30
    %v122 = vshll.u32 %v121, 30
    %v123 = vsub.s32 %v119, %v122
    %vm124 = vcmp.lt.s32.totalorder %v123, 0
    %v125 = vsub.s32 0, %v123
    %v126 = vsel %vm124, %v125, %v123
    %v127 = vclz %v126
    %v128 = vsub.s32 %v127, 2
    %vm129 = vcmp.gt.s32.totalorder 0, %v128
    %v130 = vsel %vm129, 0, %v128
    %v131 = vsub.s32 32, %v130
    %v132 = vshll.u32 %v123, %v130
    %v133 = vshrl.u32 %v115, %v131
    %v134 = vor.u32 %v132, %v133
    %v135 = vsub.s32 4294967266, %v130
    %v136 = vadd.s32 %v135, 127
    %v137 = vshll.u32 %v136, 23
    %v138 = vor.u32 4788187, %v137
    %v139 = vand.u32 2147483647, %v138
    %v141 = vcvt.s32.f32 %v134
    %v142 = vmul.f32 %v141, %v139
    %v143 = vxor.u32 %v142, 2147483648
    %v144 = vsel %vm61, %v143, %v142
    %v145 = vsub.s32 4, %v121
    %v146 = vsel %vm61, %v145, %v121
    %v147 = vsel %vm60, %v58, %v144
    %v148 = vsel %vm60, 0, %v146
    %v149 = vcosq.f32.pop %v147
    %v150 = vsinq.f32.pop %v147
    %vm151 = vweird.f32 %v58
    %v152 = vadd.s32 %v148, 3
    %v153 = vand.u32 %v152, 3
    %vm154 = vcmp.lt.s32.totalorder %v153, 2
    %vm155 = vcmp.eq.s32.totalorder %v153, 0
    %v156 = vxor.u32 %v150, 2147483648
    %v157 = vsel %vm155, %v149, %v156
    %vm158 = vcmp.eq.s32.totalorder %v153, 2
    %v159 = vxor.u32 %v149, 2147483648
    %v160 = vsel %vm158, %v159, %v150
    %v161 = vsel %vm154, %v157, %v160
    %v162 = vsel %vm151, nan, %v161
    %v163 = vand.u32 2147483647, %v58
    %vm164 = vcmp.le.f32.partialorder %v163, 0.7853982
    %vm165 = vcmp.lt.s32.totalorder %v58, 0
    %v166 = vand.u32 %v58, 2139095040
    %v167 = vshrl.u32 %v166, 23
    %v168 = vsub.s32 %v167, 127
    %v169 = vand.u32 2147483647, %v58
    %v170 = vand.u32 %v169, 8388607
    %v171 = vor.u32 %v170, 8388608
    %v172 = vsub.s32 0, %v171
    %v173 = vadd.s32 %v168, 1
    %vm174 = vcmp.gt.s32.totalorder %v173, 0
    %v175 = vsel %vm174, %v173, 0
    %v176 = vshrl.u32 %v175, 5
    %v177 = vand.u32 %v175, 31
    %v178 = vsub.s32 32, %v177
    %v179 = vshrl.u32 683565275, %v178
    %v180 = vshll.u32 683565275, %v177
    %v181 = vshrl.u32 2475754826, %v178
    %v182 = vor.u32 %v180, %v181
    %v183 = vshll.u32 2475754826, %v177
    %v184 = vshrl.u32 2131351028, %v178
    %v185 = vor.u32 %v183, %v184
    %v186 = vshll.u32 2131351028, %v177
    %v187 = vshrl.u32 2102212464, %v178
    %v188 = vor.u32 %v186, %v187
    %v189 = vshll.u32 2102212464, %v177
    %v190 = vshrl.u32 920167782, %v178
    %v191 = vor.u32 %v189, %v190
    %v192 = vshll.u32 920167782, %v177
    %v193 = vshrl.u32 1326507024, %v178
    %v194 = vor.u32 %v192, %v193
    %vm195 = vcmp.lt.s32.totalorder %v176, 1
    %vm196 = vcmp.lt.s32.totalorder %v176, 2
    %vm197 = vcmp.lt.s32.totalorder %v176, 3
    %vm198 = vcmp.lt.s32.totalorder %v176, 4
    %v199 = vsel %vm195, %v179, %v182
    %v200 = vsel %vm198, %v188, 2102212464
    %v201 = vsel %vm197, %v185, %v200
    %v202 = vsel %vm196, %v199, %v201
    %v203 = vsel %vm195, %v182, %v185
    %v204 = vsel %vm198, %v191, 920167782
    %v205 = vsel %vm197, %v188, %v204
    %v206 = vsel %vm196, %v203, %v205
    %v207 = vsel %vm195, %v185, %v188
    %v208 = vsel %vm198, %v194, 1326507024
    %v209 = vsel %vm197, %v191, %v208
    %v210 = vsel %vm196, %v207, %v209
    %v211 = vshll.u32 %v171, 8
    %v212 = vmul.u32.u64.compose %v211, %v210
    %v213 = vextract.low.u32 %v212
    %v214 = vextract.high.u32 %v212
    %v215 = vmul.u32.u64.compose %v211, %v206
    %v216 = vextract.low.u32 %v215
    %v217 = vextract.high.u32 %v215
    %v218 = vmul.u32 %v211, %v202
    %v219 = vadd.s32 %v214, %v216
    %vm220 = vc.u32 %v214, %v216
    %v221 = vadd.s32 %v217, 1
    %v222 = vsel %vm220, %v221, %v217
    %v223 = vadd.s32 %v218, %v222
    %v224 = vadd.s32 %v223, 536870912
    %v225 = vshrl.u32 %v224, 30
    %v226 = vshll.u32 %v225, 30
    %v227 = vsub.s32 %v223, %v226
    %vm228 = vcmp.lt.s32.totalorder %v227, 0
    %v229 = vsub.s32 0, %v227
    %v230 = vsel %vm228, %v229, %v227
    %v231 = vclz %v230
    %v232 = vsub.s32 %v231, 2
    %vm233 = vcmp.gt.s32.totalorder 0, %v232
    %v234 = vsel %vm233, 0, %v232
    %v235 = vsub.s32 32, %v234
    %v236 = vshll.u32 %v227, %v234
    %v237 = vshrl.u32 %v219, %v235
    %v238 = vor.u32 %v236, %v237
    %v239 = vsub.s32 4294967266, %v234
    %v240 = vadd.s32 %v239, 127
    %v241 = vshll.u32 %v240, 23
    %v242 = vor.u32 4788187, %v241
    %v243 = vand.u32 2147483647, %v242
    %v245 = vcvt.s32.f32 %v238
    %v246 = vmul.f32 %v245, %v243
    %v247 = vxor.u32 %v246, 2147483648
    %v248 = vsel %vm165, %v247, %v246
    %v249 = vsub.s32 4, %v225
    %v250 = vsel %vm165, %v249, %v225
    %v251 = vsel %vm164, %v58, %v248
    %v252 = vsel %vm164, 0, %v250
    %v253 = vcosq.f32.pop %v251
    %v254 = vsinq.f32.pop %v251
    %vm255 = vweird.f32 %v58
    %v256 = vand.u32 %v252, 3
    %vm257 = vcmp.lt.s32.totalorder %v256, 2
    %vm258 = vcmp.eq.s32.totalorder %v256, 0
    %v259 = vxor.u32 %v254, 2147483648
    %v260 = vsel %vm258, %v253, %v259
    %vm261 = vcmp.eq.s32.totalorder %v256, 2
    %v262 = vxor.u32 %v253, 2147483648
    %v263 = vsel %vm261, %v262, %v254
    %v264 = vsel %vm257, %v260, %v263
    %v265 = vsel %vm255, nan, %v264
    %v267 = vrot.slane %v162, 5
    %v270 = vrot.slane %v265, 7
    %v272 = vsel %vm53, %v35, %v267
    %v273 = vsel %vm49, %v267, %v270
    %v274 = vld [vmem:[%s2] sm:$0xff]
    %v275 = vld [vmem:[%s2 + $0x8] sm:$0xff]
    %v276 = vld [vmem:[%s2 + $0x10] sm:$0xff]
    %v277 = vld [vmem:[%s2 + $0x18] sm:$0xff]
    %v278 = vld [vmem:[%s1] sm:$0xff]
    %v279 = vld [vmem:[%s1 + $0x8] sm:$0xff]
    %v280 = vld [vmem:[%s1 + $0x10] sm:$0xff]
    %v281 = vld [vmem:[%s1 + $0x18] sm:$0xff]
    %283 = vset.pattern.permute.xlu0 0
    %284 = vperm.xlu0 %283, %v274
    %v285 = vpop.permute.xlu0 %284
    %288 = vset.pattern.permute.xlu0 0
    %289 = vperm.xlu0 %288, %v275
    %v290 = vpop.permute.xlu0 %289
    %293 = vset.pattern.permute.xlu0 0
    %294 = vperm.xlu0 %293, %v276
    %v295 = vpop.permute.xlu0 %294
    %298 = vset.pattern.permute.xlu0 0
    %299 = vperm.xlu0 %298, %v277
    %v300 = vpop.permute.xlu0 %299
    %vm302 = vcmask 121856
    %v304 = vsel %vm302, %v278, 0
    %v307 = vsel %vm302, %v279, 0
    %v310 = vsel %vm302, %v280, 0
    %v313 = vsel %vm302, %v281, 0
    %vm315 = vcmask 1046528
    %v317 = vsel %vm315, %v273, 0
    %319 = vmatprep.subr.mxu0 0.0
    %320 = vmatpush1.msra.mxu0 %v272
    %321 = vmatprep.subr.mxu0 0.0
    %322 = vmatpush1.msra.mxu0 %v317
    %323 = vmatprep.subr.mxu0 0.0
    %324 = vmatpush1.msra.mxu0 0.0
    %325 = vmatprep.subr.mxu0 0.0
    %326 = vmatpush1.msra.mxu0 0.0
    %327 = vmatprep.subr.mxu0 0.0
    %328 = vmatpush1.msra.mxu0 0.0
    %329 = vmatprep.subr.mxu0 0.0
    %330 = vmatpush1.msra.mxu0 0.0
    %331 = vmatprep.subr.mxu0 0.0
    %332 = vmatpush1.msra.mxu0 0.0
    %333 = vmatprep.subr.mxu0 0.0
    %334 = vmatpush1.msra.mxu0 0.0
    %335 = vmatprep.subr.mxu0 0.0
    %336 = vmatpush1.msra.mxu0 0.0
    %337 = vmatprep.subr.mxu0 0.0
    %338 = vmatpush1.msra.mxu0 0.0
    %339 = vmatprep.subr.mxu0 0.0
    %340 = vmatpush1.msra.mxu0 0.0
    %341 = vmatprep.subr.mxu0 0.0
    %342 = vmatpush1.msra.mxu0 0.0
    %343 = vmatprep.subr.mxu0 0.0
    %344 = vmatpush1.msra.mxu0 0.0
    %345 = vmatprep.subr.mxu0 0.0
    %346 = vmatpush1.msra.mxu0 0.0
    %347 = vmatprep.subr.mxu0 0.0
    %348 = vmatpush1.msra.mxu0 0.0
    %349 = vmatprep.subr.mxu0 0.0
    %350 = vmatpush1.msra.mxu0 0.0
    %351 = vmatprep.subr.mxu0 0.0
    %352 = vmatpush1.msra.mxu0 0.0
    %353 = vmatprep.subr.mxu0 0.0
    %354 = vmatpush1.msra.mxu0 0.0
    %355 = vmatprep.subr.mxu0 0.0
    %356 = vmatpush1.msra.mxu0 0.0
    %357 = vmatprep.subr.mxu0 0.0
    %358 = vmatpush1.msra.mxu0 0.0
    %359 = vmatprep.subr.mxu0 0.0
    %360 = vmatpush1.msra.mxu0 0.0
    %361 = vmatprep.subr.mxu0 0.0
    %362 = vmatpush1.msra.mxu0 0.0
    %363 = vmatprep.subr.mxu0 0.0
    %364 = vmatpush1.msra.mxu0 0.0
    %365 = vmatprep.subr.mxu0 0.0
    %366 = vmatpush1.msra.mxu0 0.0
    %367 = vmatprep.subr.mxu0 0.0
    %368 = vmatpush1.msra.mxu0 0.0
    %369 = vmatprep.subr.mxu0 0.0
    %370 = vmatpush1.msra.mxu0 0.0
    %371 = vmatprep.subr.mxu0 0.0
    %372 = vmatpush1.msra.mxu0 0.0
    %373 = vmatprep.subr.mxu0 0.0
    %374 = vmatpush1.msra.mxu0 0.0
    %375 = vmatprep.subr.mxu0 0.0
    %376 = vmatpush1.msra.mxu0 0.0
    %377 = vmatprep.subr.mxu0 0.0
    %378 = vmatpush1.msra.mxu0 0.0
    %379 = vmatprep.subr.mxu0 0.0
    %380 = vmatpush1.msra.mxu0 0.0
    %381 = vmatprep.subr.mxu0 0.0
    %382 = vmatpush1.msra.mxu0 0.0
    %383 = vmatprep.mubr.f32.mxu0 0.0
    %384 = vmatmul.mubr.f32.gmra.mrb[0].mxu0 %v304
    %v385 = vpop.f32.mrb[0].mxu0
    %v386 = vadd.f32 %v285, %v385
    %v387 = vpop.f32.mrb[0].mxu0
    %388 = vmatprep.mubr.f32.mxu0 0.0
    %389 = vmatmul.mubr.f32.gmra.mrb[0].mxu0 %v307
    %v390 = vpop.f32.mrb[0].mxu0
    %v391 = vadd.f32 %v290, %v390
    %v392 = vpop.f32.mrb[0].mxu0
    %393 = vmatprep.mubr.f32.mxu0 0.0
    %394 = vmatmul.mubr.f32.gmra.mrb[0].mxu0 %v310
    %v395 = vpop.f32.mrb[0].mxu0
    %v396 = vadd.f32 %v295, %v395
    %v397 = vpop.f32.mrb[0].mxu0
    %398 = vmatprep.mubr.f32.mxu0 0.0
    %399 = vmatmul.mubr.f32.gmra.mrb[0].mxu0 %v313
    %v400 = vpop.f32.mrb[0].mxu0
    %v401 = vadd.f32 %v300, %v400
    %v402 = vpop.f32.mrb[0].mxu0
    %403 = vdwg.mxu0
    %v404 = vmax.f32 %v386, 0.0
    %v405 = vmax.f32 %v391, 0.0
    %v406 = vmax.f32 %v396, 0.0
    %v407 = vmax.f32 %v401, 0.0
    %v408 = vld [vmem:[%s4] sm:$0xff]
    %v409 = vld [vmem:[%s4 + $0x8] sm:$0xff]
    %v410 = vld [vmem:[%s4 + $0x10] sm:$0xff]
    %v411 = vld [vmem:[%s4 + $0x18] sm:$0xff]
    %v412 = vld [vmem:[%s3] sm:$0xff]
    %v413 = vld [vmem:[%s3 + $0x8] sm:$0xff]
    %v414 = vld [vmem:[%s3 + $0x10] sm:$0xff]
    %v415 = vld [vmem:[%s3 + $0x18] sm:$0xff]
    %417 = vset.pattern.permute.xlu0 0
    %418 = vperm.xlu0 %417, %v408
    %v419 = vpop.permute.xlu0 %418
    %422 = vset.pattern.permute.xlu0 0
    %423 = vperm.xlu0 %422, %v409
    %v424 = vpop.permute.xlu0 %423
    %427 = vset.pattern.permute.xlu0 0
    %428 = vperm.xlu0 %427, %v410
    %v429 = vpop.permute.xlu0 %428
    %432 = vset.pattern.permute.xlu0 0
    %433 = vperm.xlu0 %432, %v411
    %v434 = vpop.permute.xlu0 %433
    %vm436 = vcmask 261120
    %v438 = vsel %vm436, %v412, 0
    %v441 = vsel %vm436, %v413, 0
    %v444 = vsel %vm436, %v414, 0
    %v447 = vsel %vm436, %v415, 0
    %449 = vmatprep.subr.mxu0 0.0
    %450 = vmatpush1.msra.mxu0 %v404
    %451 = vmatprep.subr.mxu0 0.0
    %452 = vmatpush1.msra.mxu0 %v405
    %453 = vmatprep.subr.mxu0 0.0
    %454 = vmatpush1.msra.mxu0 %v406
    %455 = vmatprep.subr.mxu0 0.0
    %456 = vmatpush1.msra.mxu0 %v407
    %457 = vmatprep.subr.mxu0 0.0
    %458 = vmatpush1.msra.mxu0 0.0
    %459 = vmatprep.subr.mxu0 0.0
    %460 = vmatpush1.msra.mxu0 0.0
    %461 = vmatprep.subr.mxu0 0.0
    %462 = vmatpush1.msra.mxu0 0.0
    %463 = vmatprep.subr.mxu0 0.0
    %464 = vmatpush1.msra.mxu0 0.0
    %465 = vmatprep.subr.mxu0 0.0
    %466 = vmatpush1.msra.mxu0 0.0
    %467 = vmatprep.subr.mxu0 0.0
    %468 = vmatpush1.msra.mxu0 0.0
    %469 = vmatprep.subr.mxu0 0.0
    %470 = vmatpush1.msra.mxu0 0.0
    %471 = vmatprep.subr.mxu0 0.0
    %472 = vmatpush1.msra.mxu0 0.0
    %473 = vmatprep.subr.mxu0 0.0
    %474 = vmatpush1.msra.mxu0 0.0
    %475 = vmatprep.subr.mxu0 0.0
    %476 = vmatpush1.msra.mxu0 0.0
    %477 = vmatprep.subr.mxu0 0.0
    %478 = vmatpush1.msra.mxu0 0.0
    %479 = vmatprep.subr.mxu0 0.0
    %480 = vmatpush1.msra.mxu0 0.0
    %481 = vmatprep.subr.mxu0 0.0
    %482 = vmatpush1.msra.mxu0 0.0
    %483 = vmatprep.subr.mxu0 0.0
    %484 = vmatpush1.msra.mxu0 0.0
    %485 = vmatprep.subr.mxu0 0.0
    %486 = vmatpush1.msra.mxu0 0.0
    %487 = vmatprep.subr.mxu0 0.0
    %488 = vmatpush1.msra.mxu0 0.0
    %489 = vmatprep.subr.mxu0 0.0
    %490 = vmatpush1.msra.mxu0 0.0
    %491 = vmatprep.subr.mxu0 0.0
    %492 = vmatpush1.msra.mxu0 0.0
    %493 = vmatprep.subr.mxu0 0.0
    %494 = vmatpush1.msra.mxu0 0.0
    %495 = vmatprep.subr.mxu0 0.0
    %496 = vmatpush1.msra.mxu0 0.0
    %497 = vmatprep.subr.mxu0 0.0
    %498 = vmatpush1.msra.mxu0 0.0
    %499 = vmatprep.subr.mxu0 0.0
    %500 = vmatpush1.msra.mxu0 0.0
    %501 = vmatprep.subr.mxu0 0.0
    %502 = vmatpush1.msra.mxu0 0.0
    %503 = vmatprep.subr.mxu0 0.0
    %504 = vmatpush1.msra.mxu0 0.0
    %505 = vmatprep.subr.mxu0 0.0
    %506 = vmatpush1.msra.mxu0 0.0
    %507 = vmatprep.subr.mxu0 0.0
    %508 = vmatpush1.msra.mxu0 0.0
    %509 = vmatprep.subr.mxu0 0.0
    %510 = vmatpush1.msra.mxu0 0.0
    %511 = vmatprep.subr.mxu0 0.0
    %512 = vmatpush1.msra.mxu0 0.0
    %513 = vmatprep.mubr.f32.mxu0 0.0
    %514 = vmatmul.mubr.f32.gmra.mrb[0].mxu0 %v438
    %v515 = vpop.f32.mrb[0].mxu0
    %v516 = vadd.f32 %v419, %v515
    %v517 = vpop.f32.mrb[0].mxu0
    %518 = vmatprep.mubr.f32.mxu0 0.0
    %519 = vmatmul.mubr.f32.gmra.mrb[0].mxu0 %v441
    %v520 = vpop.f32.mrb[0].mxu0
    %v521 = vadd.f32 %v424, %v520
    %v522 = vpop.f32.mrb[0].mxu0
    %523 = vmatprep.mubr.f32.mxu0 0.0
    %524 = vmatmul.mubr.f32.gmra.mrb[0].mxu0 %v444
    %v525 = vpop.f32.mrb[0].mxu0
    %v526 = vadd.f32 %v429, %v525
    %v527 = vpop.f32.mrb[0].mxu0
    %528 = vmatprep.mubr.f32.mxu0 0.0
    %529 = vmatmul.mubr.f32.gmra.mrb[0].mxu0 %v447
    %v530 = vpop.f32.mrb[0].mxu0
    %v531 = vadd.f32 %v434, %v530
    %v532 = vpop.f32.mrb[0].mxu0
    %533 = vdwg.mxu0
    %v534 = vmax.f32 %v516, 0.0
    %v535 = vmax.f32 %v521, 0.0
    %v536 = vmax.f32 %v526, 0.0
    %v537 = vmax.f32 %v531, 0.0
    %v538 = vld [vmem:[%s6] sm:$0xff]
    %v539 = vld [vmem:[%s6 + $0x8] sm:$0xff]
    %v540 = vld [vmem:[%s6 + $0x10] sm:$0xff]
    %v541 = vld [vmem:[%s6 + $0x18] sm:$0xff]
    %v542 = vld [vmem:[%s5] sm:$0xff]
    %v543 = vld [vmem:[%s5 + $0x8] sm:$0xff]
    %v544 = vld [vmem:[%s5 + $0x10] sm:$0xff]
    %v545 = vld [vmem:[%s5 + $0x18] sm:$0xff]
    %547 = vset.pattern.permute.xlu0 0
    %548 = vperm.xlu0 %547, %v538
    %v549 = vpop.permute.xlu0 %548
    %552 = vset.pattern.permute.xlu0 0
    %553 = vperm.xlu0 %552, %v539
    %v554 = vpop.permute.xlu0 %553
    %557 = vset.pattern.permute.xlu0 0
    %558 = vperm.xlu0 %557, %v540
    %v559 = vpop.permute.xlu0 %558
    %562 = vset.pattern.permute.xlu0 0
    %563 = vperm.xlu0 %562, %v541
    %v564 = vpop.permute.xlu0 %563
    %v567 = vsel %vm436, %v542, 0
    %v570 = vsel %vm436, %v543, 0
    %v573 = vsel %vm436, %v544, 0
    %v576 = vsel %vm436, %v545, 0
    %578 = vmatprep.subr.mxu0 0.0
    %579 = vmatpush1.msra.mxu0 %v534
    %580 = vmatprep.subr.mxu0 0.0
    %581 = vmatpush1.msra.mxu0 %v535
    %582 = vmatprep.subr.mxu0 0.0
    %583 = vmatpush1.msra.mxu0 %v536
    %584 = vmatprep.subr.mxu0 0.0
    %585 = vmatpush1.msra.mxu0 %v537
    %586 = vmatprep.subr.mxu0 0.0
    %587 = vmatpush1.msra.mxu0 0.0
    %588 = vmatprep.subr.mxu0 0.0
    %589 = vmatpush1.msra.mxu0 0.0
    %590 = vmatprep.subr.mxu0 0.0
    %591 = vmatpush1.msra.mxu0 0.0
    %592 = vmatprep.subr.mxu0 0.0
    %593 = vmatpush1.msra.mxu0 0.0
    %594 = vmatprep.subr.mxu0 0.0
    %595 = vmatpush1.msra.mxu0 0.0
    %596 = vmatprep.subr.mxu0 0.0
    %597 = vmatpush1.msra.mxu0 0.0
    %598 = vmatprep.subr.mxu0 0.0
    %599 = vmatpush1.msra.mxu0 0.0
    %600 = vmatprep.subr.mxu0 0.0
    %601 = vmatpush1.msra.mxu0 0.0
    %602 = vmatprep.subr.mxu0 0.0
    %603 = vmatpush1.msra.mxu0 0.0
    %604 = vmatprep.subr.mxu0 0.0
    %605 = vmatpush1.msra.mxu0 0.0
    %606 = vmatprep.subr.mxu0 0.0
    %607 = vmatpush1.msra.mxu0 0.0
    %608 = vmatprep.subr.mxu0 0.0
    %609 = vmatpush1.msra.mxu0 0.0
    %610 = vmatprep.subr.mxu0 0.0
    %611 = vmatpush1.msra.mxu0 0.0
    %612 = vmatprep.subr.mxu0 0.0
    %613 = vmatpush1.msra.mxu0 0.0
    %614 = vmatprep.subr.mxu0 0.0
    %615 = vmatpush1.msra.mxu0 0.0
    %616 = vmatprep.subr.mxu0 0.0
    %617 = vmatpush1.msra.mxu0 0.0
    %618 = vmatprep.subr.mxu0 0.0
    %619 = vmatpush1.msra.mxu0 0.0
    %620 = vmatprep.subr.mxu0 0.0
    %621 = vmatpush1.msra.mxu0 0.0
    %622 = vmatprep.subr.mxu0 0.0
    %623 = vmatpush1.msra.mxu0 0.0
    %624 = vmatprep.subr.mxu0 0.0
    %625 = vmatpush1.msra.mxu0 0.0
    %626 = vmatprep.subr.mxu0 0.0
    %627 = vmatpush1.msra.mxu0 0.0
    %628 = vmatprep.subr.mxu0 0.0
    %629 = vmatpush1.msra.mxu0 0.0
    %630 = vmatprep.subr.mxu0 0.0
    %631 = vmatpush1.msra.mxu0 0.0
    %632 = vmatprep.subr.mxu0 0.0
    %633 = vmatpush1.msra.mxu0 0.0
    %634 = vmatprep.subr.mxu0 0.0
    %635 = vmatpush1.msra.mxu0 0.0
    %636 = vmatprep.subr.mxu0 0.0
    %637 = vmatpush1.msra.mxu0 0.0
    %638 = vmatprep.subr.mxu0 0.0
    %639 = vmatpush1.msra.mxu0 0.0
    %640 = vmatprep.subr.mxu0 0.0
    %641 = vmatpush1.msra.mxu0 0.0
    %642 = vmatprep.mubr.f32.mxu0 0.0
    %643 = vmatmul.mubr.f32.gmra.mrb[0].mxu0 %v567
    %v644 = vpop.f32.mrb[0].mxu0
    %v645 = vadd.f32 %v549, %v644
    %v646 = vpop.f32.mrb[0].mxu0
    %647 = vmatprep.mubr.f32.mxu0 0.0
    %648 = vmatmul.mubr.f32.gmra.mrb[0].mxu0 %v570
    %v649 = vpop.f32.mrb[0].mxu0
    %v650 = vadd.f32 %v554, %v649
    %v651 = vpop.f32.mrb[0].mxu0
    %652 = vmatprep.mubr.f32.mxu0 0.0
    %653 = vmatmul.mubr.f32.gmra.mrb[0].mxu0 %v573
    %v654 = vpop.f32.mrb[0].mxu0
    %v655 = vadd.f32 %v559, %v654
    %v656 = vpop.f32.mrb[0].mxu0
    %657 = vmatprep.mubr.f32.mxu0 0.0
    %658 = vmatmul.mubr.f32.gmra.mrb[0].mxu0 %v576
    %v659 = vpop.f32.mrb[0].mxu0
    %v660 = vadd.f32 %v564, %v659
    %v661 = vpop.f32.mrb[0].mxu0
    %662 = vdwg.mxu0
    %v663 = vmax.f32 %v645, 0.0
    %v664 = vmax.f32 %v650, 0.0
    %v665 = vmax.f32 %v655, 0.0
    %v666 = vmax.f32 %v660, 0.0
    %v667 = vld [vmem:[#allocation2] sm:$0x1]
    %v668 = vld [vmem:[%s7] sm:$0x1]
    %670 = vset.pattern.permute.xlu0 0
    %671 = vperm.xlu0 %670, %v667
    %v672 = vpop.permute.xlu0 %671
    %v674 = vlaneseq
    %v675 = vshrl.u32 %v674, 7
    %v676 = vsub.s32 0, %v675
    %v677 = vrot.slane %v672, %v676
    %v679 = vsel %vm436, %v668, 0
    %681 = vmatprep.subr.mxu0 0.0
    %682 = vmatpush1.msra.mxu0 %v663
    %683 = vmatprep.subr.mxu0 0.0
    %684 = vmatpush1.msra.mxu0 %v664
    %685 = vmatprep.subr.mxu0 0.0
    %686 = vmatpush1.msra.mxu0 %v665
    %687 = vmatprep.subr.mxu0 0.0
    %688 = vmatpush1.msra.mxu0 %v666
    %689 = vmatprep.subr.mxu0 0.0
    %690 = vmatpush1.msra.mxu0 0.0
    %691 = vmatprep.subr.mxu0 0.0
    %692 = vmatpush1.msra.mxu0 0.0
    %693 = vmatprep.subr.mxu0 0.0
    %694 = vmatpush1.msra.mxu0 0.0
    %695 = vmatprep.subr.mxu0 0.0
    %696 = vmatpush1.msra.mxu0 0.0
    %697 = vmatprep.subr.mxu0 0.0
    %698 = vmatpush1.msra.mxu0 0.0
    %699 = vmatprep.subr.mxu0 0.0
    %700 = vmatpush1.msra.mxu0 0.0
    %701 = vmatprep.subr.mxu0 0.0
    %702 = vmatpush1.msra.mxu0 0.0
    %703 = vmatprep.subr.mxu0 0.0
    %704 = vmatpush1.msra.mxu0 0.0
    %705 = vmatprep.subr.mxu0 0.0
    %706 = vmatpush1.msra.mxu0 0.0
    %707 = vmatprep.subr.mxu0 0.0
    %708 = vmatpush1.msra.mxu0 0.0
    %709 = vmatprep.subr.mxu0 0.0
    %710 = vmatpush1.msra.mxu0 0.0
    %711 = vmatprep.subr.mxu0 0.0
    %712 = vmatpush1.msra.mxu0 0.0
    %713 = vmatprep.subr.mxu0 0.0
    %714 = vmatpush1.msra.mxu0 0.0
    %715 = vmatprep.subr.mxu0 0.0
    %716 = vmatpush1.msra.mxu0 0.0
    %717 = vmatprep.subr.mxu0 0.0
    %718 = vmatpush1.msra.mxu0 0.0
    %719 = vmatprep.subr.mxu0 0.0
    %720 = vmatpush1.msra.mxu0 0.0
    %721 = vmatprep.subr.mxu0 0.0
    %722 = vmatpush1.msra.mxu0 0.0
    %723 = vmatprep.subr.mxu0 0.0
    %724 = vmatpush1.msra.mxu0 0.0
    %725 = vmatprep.subr.mxu0 0.0
    %726 = vmatpush1.msra.mxu0 0.0
    %727 = vmatprep.subr.mxu0 0.0
    %728 = vmatpush1.msra.mxu0 0.0
    %729 = vmatprep.subr.mxu0 0.0
    %730 = vmatpush1.msra.mxu0 0.0
    %731 = vmatprep.subr.mxu0 0.0
    %732 = vmatpush1.msra.mxu0 0.0
    %733 = vmatprep.subr.mxu0 0.0
    %734 = vmatpush1.msra.mxu0 0.0
    %735 = vmatprep.subr.mxu0 0.0
    %736 = vmatpush1.msra.mxu0 0.0
    %737 = vmatprep.subr.mxu0 0.0
    %738 = vmatpush1.msra.mxu0 0.0
    %739 = vmatprep.subr.mxu0 0.0
    %740 = vmatpush1.msra.mxu0 0.0
    %741 = vmatprep.subr.mxu0 0.0
    %742 = vmatpush1.msra.mxu0 0.0
    %743 = vmatprep.subr.mxu0 0.0
    %744 = vmatpush1.msra.mxu0 0.0
    %745 = vmatprep.mubr.f32.mxu0 0.0
    %746 = vmatmul.mubr.f32.gmra.mrb[0].mxu0 %v679
    %v747 = vpop.f32.mrb[0].mxu0
    %v748 = vadd.f32 %v677, %v747
    %v749 = vpop.f32.mrb[0].mxu0
    %750 = vdwg.mxu0
    %v751 = vmax.f32 %v748, 0.0
    %v752 = vand.u32 2147483647, %v748
    %v753 = vsub.f32 0.0, %v752
    %v754 = vmul.f32 %v753, 1.442695
    %v755 = vpow.pop %v754
    %v756 = vadd.f32 %v755, 1.0
    %v757 = vlog2.pop %v756
    %v758 = vmul.f32 %v757, 0.6931472
    %v759 = vmul.f32 -0.5, %v755
    %v760 = vadd.f32 %v759, 1.0
    %v761 = vmul.f32 %v760, %v755
    %v762 = vand.u32 2147483647, %v755
    %vm763 = vcmp.lt.f32.partialorder %v762, 0.0004427343
    %v764 = vsel %vm763, %v761, %v758
    %v765 = vadd.f32 %v751, %v764
    %v767 = vrot.slane %v765, 7
    %v769 = vsel %vm49, %v748, %v767
    %770 = vst [vmem:[#allocation3] sm:$0x3] %v769
    // Predicated region
    $region38: #{tpu_custom_call.1} parent=1 // pred_check
      _
    $region39: #{tpu_custom_call.1} parent=1 // pred_check_branch
      %772 = sbr.rel (0) target = $region41
    $region40: #{tpu_custom_call.1} parent=1 // pred_region
      %s774 = ssub.s32 32, 32
      %775 = vsyncadd [#allocation4], %s774
      %s777 = sshll.u32 [#allocation3], 4
      %s778 = int_to_ptr.vmem [resolvable:$true] %s777
      %780 = dma.vmem_to_hbm [thread:$0]  %s778, 32, %s9, [#allocation4]
    $region41: #{tpu_custom_call.1} parent=1 // pred_fallthru
      _
    // Predicated region
    $region42: #{tpu_custom_call.1} parent=1 // pred_check
      _
    $region43: #{tpu_custom_call.1} parent=1 // pred_check_branch
      %782 = sbr.rel (0) target = $region45
    $region44: #{tpu_custom_call.1} parent=1 // pred_region
      %783 = dma.done [#allocation4], 32
    $region45: #{tpu_custom_call.1} parent=1 // pred_fallthru
      _
    %784 = vsyncpa [#allocation4], 1

</llo_original>
